<compile_context>
chip_gen: v6e
topology: v6e:2x2x1
jax: 0.10.0
libtpu: 0.0.40
codegen_flags: <defaults>
</compile_context>

<pallas_src>
import jax
import jax.numpy as jnp
from jax.experimental import pallas as pl
from jax.experimental.pallas import tpu as pltpu

INPUT_SIZE = 3 * 15 * 15 + 1   # 676
HIDDEN_SIZE = 128
OUTPUT_SIZE = 15 * 15          # 225

IN_PAD = 768                   # 6 * 128 lane-aligned K for fc1
OUT_PAD = 256                  # 2 * 128 lane-dense output tile


def _round_up(n, m):
    return (n + m - 1) // m * m


def _mlp_kernel(x_ref, w1_ref, b1_ref, w2_ref, b2_ref, out_ref):
    # fc1: bf16 MXU matmul, f32 accumulate; bias + ReLU in f32.
    h = jnp.dot(x_ref[...].astype(jnp.bfloat16), w1_ref[...],
                preferred_element_type=jnp.float32)
    h = jnp.maximum(h + b1_ref[...], 0.0)
    # fc2: bf16 MXU matmul, f32 accumulate; bias in f32.
    y = jnp.dot(h.astype(jnp.bfloat16), w2_ref[...],
                preferred_element_type=jnp.float32) + b2_ref[...]
    out_ref[...] = y


def _mlp_mask_kernel(x_ref, w1_ref, b1_ref, w2_ref, b2_ref, mask_ref, out_ref):
    h = jnp.dot(x_ref[...].astype(jnp.bfloat16), w1_ref[...],
                preferred_element_type=jnp.float32)
    h = jnp.maximum(h + b1_ref[...], 0.0)
    y = jnp.dot(h.astype(jnp.bfloat16), w2_ref[...],
                preferred_element_type=jnp.float32) + b2_ref[...]
    # torch.where(action_mask, x, -inf)
    out_ref[...] = jnp.where(mask_ref[...] != 0, y, -jnp.inf)


def gomoku_lfc1hn_forward(x, params, action_mask=None, *, batch_tile=256):
    """Pallas forward pass of GomokuLFC1HNNet.

    x:           [B, 676] float32
    params:      dict with padded bf16 weights / f32 biases (see init_params)
                 w1 [768,128] bf16, b1 [1,128] f32, w2 [128,256] bf16, b2 [1,256] f32
    action_mask: optional [B, 225] bool/int; nonzero keeps logit, zero -> -inf.
    returns:     [B, 225] float32
    """
    B = x.shape[0]
    # Single tile for small batches (rounded to a sublane multiple); 256-row
    # tiles for large batches -> pipelined grid, well under v7x's 32 MiB scoped VMEM.
    TB = batch_tile if B >= batch_tile else _round_up(max(B, 1), 8)
    B_pad = _round_up(B, TB)
    grid = (B_pad // TB,)

    # Zero-pad x: [B, 676] -> [B_pad, 768] (padded K columns hit zero weights).
    x_p = jnp.pad(x.astype(jnp.float32),
                  ((0, B_pad - B), (0, IN_PAD - INPUT_SIZE)))

    x_spec = pl.BlockSpec((TB, IN_PAD), lambda i: (i, 0))
    w1_spec = pl.BlockSpec((IN_PAD, HIDDEN_SIZE), lambda i: (0, 0))
    b1_spec = pl.BlockSpec((1, HIDDEN_SIZE), lambda i: (0, 0))
    w2_spec = pl.BlockSpec((HIDDEN_SIZE, OUT_PAD), lambda i: (0, 0))
    b2_spec = pl.BlockSpec((1, OUT_PAD), lambda i: (0, 0))
    out_spec = pl.BlockSpec((TB, OUT_PAD), lambda i: (i, 0))

    out_shape = jax.ShapeDtypeStruct((B_pad, OUT_PAD), jnp.float32)
    compiler_params = pltpu.CompilerParams(dimension_semantics=("parallel",))

    flops = 2 * B_pad * (IN_PAD * HIDDEN_SIZE + HIDDEN_SIZE * OUT_PAD)
    bytes_accessed = (x_p.size * 4
                      + params["w1"].size * 2 + params["w2"].size * 2
                      + params["b1"].size * 4 + params["b2"].size * 4
                      + B_pad * OUT_PAD * 4)

    if action_mask is None:
        out = pl.pallas_call(
            _mlp_kernel,
            out_shape=out_shape,
            grid=grid,
            in_specs=[x_spec, w1_spec, b1_spec, w2_spec, b2_spec],
            out_specs=out_spec,
            compiler_params=compiler_params,
            cost_estimate=pl.CostEstimate(flops=flops, transcendentals=0,
                                          bytes_accessed=bytes_accessed),
        )(x_p, params["w1"], params["b1"], params["w2"], params["b2"])
        return out[:B, :OUTPUT_SIZE]

    # int8 mask (1 byte/elem); padded rows/cols are discarded by the final slice.
    mask_p = jnp.pad(action_mask.astype(jnp.int8),
                     ((0, B_pad - B), (0, OUT_PAD - OUTPUT_SIZE)))
    mask_spec = pl.BlockSpec((TB, OUT_PAD), lambda i: (i, 0))
    bytes_accessed += mask_p.size  # 1 B per mask element

    out = pl.pallas_call(
        _mlp_mask_kernel,
        out_shape=out_shape,
        grid=grid,
        in_specs=[x_spec, w1_spec, b1_spec, w2_spec, b2_spec, mask_spec],
        out_specs=out_spec,
        compiler_params=compiler_params,
        cost_estimate=pl.CostEstimate(flops=flops, transcendentals=0,
                                      bytes_accessed=bytes_accessed),
    )(x_p, params["w1"], params["b1"], params["w2"], params["b2"], mask_p)
    return out[:B, :OUTPUT_SIZE]


def init_params(key):
    """Deterministic init mimicking nn.Linear (uniform +/- 1/sqrt(fan_in)),
    padded once (K->768, N->256) and weights stored in bf16."""
    k1, k2, k3, k4 = jax.random.split(key, 4)
    bound1 = 1.0 / jnp.sqrt(INPUT_SIZE)
    bound2 = 1.0 / jnp.sqrt(HIDDEN_SIZE)
    # [in, out] layout (transpose of PyTorch) for x @ W.
    w1 = jax.random.uniform(k1, (INPUT_SIZE, HIDDEN_SIZE), jnp.float32, -bound1, bound1)
    b1 = jax.random.uniform(k2, (1, HIDDEN_SIZE), jnp.float32, -bound1, bound1)
    w2 = jax.random.uniform(k3, (HIDDEN_SIZE, OUTPUT_SIZE), jnp.float32, -bound2, bound2)
    b2 = jax.random.uniform(k4, (1, OUTPUT_SIZE), jnp.float32, -bound2, bound2)

    w1_p = jnp.zeros((IN_PAD, HIDDEN_SIZE), jnp.float32).at[:INPUT_SIZE, :].set(w1)
    w2_p = jnp.zeros((HIDDEN_SIZE, OUT_PAD), jnp.float32).at[:, :OUTPUT_SIZE].set(w2)
    b2_p = jnp.zeros((1, OUT_PAD), jnp.float32).at[:, :OUTPUT_SIZE].set(b2)
    return {
        "w1": w1_p.astype(jnp.bfloat16),
        "b1": b1,
        "w2": w2_p.astype(jnp.bfloat16),
        "b2": b2_p,
    }


if __name__ == "__main__":
    key = jax.random.PRNGKey(0)
    kp, kx, km = jax.random.split(key, 3)

    params = init_params(kp)

    B = 8
    x = jax.random.normal(kx, (B, INPUT_SIZE), jnp.float32)
    action_mask = jax.random.bernoulli(km, p=0.7, shape=(B, OUTPUT_SIZE))

    # Masked forward (Pallas)
    out_masked = jax.block_until_ready(gomoku_lfc1hn_forward(x, params, action_mask))
    # Unmasked forward (Pallas)
    out_plain = jax.block_until_ready(gomoku_lfc1hn_forward(x, params, None))

    # Pure-JAX reference emulating the kernel's bf16-input / f32-accumulate math.
    w1_f = params["w1"][:INPUT_SIZE, :].astype(jnp.float32)
    w2_f = params["w2"][:, :OUTPUT_SIZE].astype(jnp.float32)
    b2_f = params["b2"][:, :OUTPUT_SIZE]
    x_bf = x.astype(jnp.bfloat16).astype(jnp.float32)
    h_ref = jnp.maximum(
        jnp.dot(x_bf, w1_f, precision=jax.lax.Precision.HIGHEST) + params["b1"], 0.0)
    h_bf = h_ref.astype(jnp.bfloat16).astype(jnp.float32)
    y_ref = jnp.dot(h_bf, w2_f, precision=jax.lax.Precision.HIGHEST) + b2_f
    y_ref_masked = jnp.where(action_mask, y_ref, -jnp.inf)

    assert out_plain.shape == (B, OUTPUT_SIZE)
    assert out_masked.shape == (B, OUTPUT_SIZE)
    assert jnp.allclose(out_plain, y_ref, atol=2e-3, rtol=2e-3)
    finite = jnp.isfinite(y_ref_masked)
    assert jnp.array_equal(finite, jnp.isfinite(out_masked))
    assert jnp.allclose(jnp.where(finite, out_masked, 0.0),
                        jnp.where(finite, y_ref_masked, 0.0),
                        atol=2e-3, rtol=2e-3)

    print("KERNEL_OK")
</pallas_src>

<mosaic_0001>
module attributes {stable_mosaic.version = 11 : i64} {
  func.func @_mlp_mask_kernel(%arg0: i32, %arg1: memref<8x768xf32, #tpu.memory_space<vmem>>, %arg2: memref<768x128xbf16, #tpu.memory_space<vmem>>, %arg3: memref<1x128xf32, #tpu.memory_space<vmem>>, %arg4: memref<128x256xbf16, #tpu.memory_space<vmem>>, %arg5: memref<1x256xf32, #tpu.memory_space<vmem>>, %arg6: memref<8x256xi8, #tpu.memory_space<vmem>>, %arg7: memref<8x256xf32, #tpu.memory_space<vmem>>) attributes {dimension_semantics = [#tpu.dimension_semantics<parallel>], iteration_bounds = array<i64: 1>, scalar_prefetch = 0 : i64, scratch_operands = 0 : i64, tpu.core_type = #tpu.core_type<tc>, window_params = [{transform_indices = @transform_0, window_bounds = array<i64: 8, 768>}, {pipeline_mode = #tpu.pipeline_mode<synchronous>, transform_indices = @transform_1, window_bounds = array<i64: 768, 128>}, {pipeline_mode = #tpu.pipeline_mode<synchronous>, transform_indices = @transform_2, window_bounds = array<i64: 1, 128>}, {pipeline_mode = #tpu.pipeline_mode<synchronous>, transform_indices = @transform_3, window_bounds = array<i64: 128, 256>}, {pipeline_mode = #tpu.pipeline_mode<synchronous>, transform_indices = @transform_4, window_bounds = array<i64: 1, 256>}, {transform_indices = @transform_5, window_bounds = array<i64: 8, 256>}, {transform_indices = @transform_6, window_bounds = array<i64: 8, 256>}]} {
    %c0 = arith.constant 0 : index
    %c0_0 = arith.constant 0 : index
    %0 = vector.load %arg1[%c0, %c0_0] : memref<8x768xf32, #tpu.memory_space<vmem>>, vector<8x768xf32>
    %1 = arith.truncf %0 : vector<8x768xf32> to vector<8x768xbf16>
    %c0_1 = arith.constant 0 : index
    %c0_2 = arith.constant 0 : index
    %2 = vector.load %arg2[%c0_1, %c0_2] : memref<768x128xbf16, #tpu.memory_space<vmem>>, vector<768x128xbf16>
    %cst = arith.constant dense<0.000000e+00> : vector<8x128xf32>
    %3 = tpu.matmul %1, %2, %cst {dimension_numbers = #tpu.dot_dimension_numbers<[1], [0], [0], [1], [0, 0, 1, 1], [], []>} : vector<8x768xbf16>, vector<768x128xbf16>, vector<8x128xf32> -> vector<8x128xf32>
    %c0_3 = arith.constant 0 : index
    %c0_4 = arith.constant 0 : index
    %4 = vector.load %arg3[%c0_3, %c0_4] : memref<1x128xf32, #tpu.memory_space<vmem>>, vector<1x128xf32>
    %5 = vector.broadcast %4 : vector<1x128xf32> to vector<8x128xf32>
    %6 = arith.addf %3, %5 : vector<8x128xf32>
    %cst_5 = arith.constant 0.000000e+00 : f32
    %7 = vector.broadcast %cst_5 : f32 to vector<8x128xf32>
    %8 = arith.maximumf %6, %7 : vector<8x128xf32>
    %9 = arith.truncf %8 : vector<8x128xf32> to vector<8x128xbf16>
    %c0_6 = arith.constant 0 : index
    %c0_7 = arith.constant 0 : index
    %10 = vector.load %arg4[%c0_6, %c0_7] : memref<128x256xbf16, #tpu.memory_space<vmem>>, vector<128x256xbf16>
    %cst_8 = arith.constant dense<0.000000e+00> : vector<8x256xf32>
    %11 = tpu.matmul %9, %10, %cst_8 {dimension_numbers = #tpu.dot_dimension_numbers<[1], [0], [0], [1], [0, 0, 1, 1], [], []>} : vector<8x128xbf16>, vector<128x256xbf16>, vector<8x256xf32> -> vector<8x256xf32>
    %c0_9 = arith.constant 0 : index
    %c0_10 = arith.constant 0 : index
    %12 = vector.load %arg5[%c0_9, %c0_10] : memref<1x256xf32, #tpu.memory_space<vmem>>, vector<1x256xf32>
    %13 = vector.broadcast %12 : vector<1x256xf32> to vector<8x256xf32>
    %14 = arith.addf %11, %13 : vector<8x256xf32>
    %c0_11 = arith.constant 0 : index
    %c0_12 = arith.constant 0 : index
    %15 = vector.load %arg6[%c0_11, %c0_12] : memref<8x256xi8, #tpu.memory_space<vmem>>, vector<8x256xi8>
    %c0_i8 = arith.constant 0 : i8
    %16 = vector.broadcast %c0_i8 : i8 to vector<8x256xi8>
    %17 = arith.cmpi ne, %15, %16 : vector<8x256xi8>
    %cst_13 = arith.constant 0xFF800000 : f32
    %18 = vector.broadcast %cst_13 : f32 to vector<8x256xf32>
    %19 = arith.select %17, %14, %18 : vector<8x256xi1>, vector<8x256xf32>
    %c0_14 = arith.constant 0 : index
    %c0_15 = arith.constant 0 : index
    %20 = vector.load %arg7[%c0_14, %c0_15] : memref<8x256xf32, #tpu.memory_space<vmem>>, vector<8x256xf32>
    tpu.vector_store %arg7[%c0_14, %c0_15], %19 {strides = array<i32>} : memref<8x256xf32, #tpu.memory_space<vmem>>, vector<8x256xf32>,
    return
  }
  func.func @transform_0(%arg0: i32) -> (i32, i32) {
    %c0_i32 = arith.constant 0 : i32
    %c0_i32_0 = arith.constant 0 : i32
    return %arg0, %c0_i32 : i32, i32
  }
  func.func @transform_1(%arg0: i32) -> (i32, i32) {
    %c0_i32 = arith.constant 0 : i32
    %c0_i32_0 = arith.constant 0 : i32
    %c0_i32_1 = arith.constant 0 : i32
    return %c0_i32, %c0_i32_0 : i32, i32
  }
  func.func @transform_2(%arg0: i32) -> (i32, i32) {
    %c0_i32 = arith.constant 0 : i32
    %c0_i32_0 = arith.constant 0 : i32
    %c0_i32_1 = arith.constant 0 : i32
    return %c0_i32, %c0_i32_0 : i32, i32
  }
  func.func @transform_3(%arg0: i32) -> (i32, i32) {
    %c0_i32 = arith.constant 0 : i32
    %c0_i32_0 = arith.constant 0 : i32
    %c0_i32_1 = arith.constant 0 : i32
    return %c0_i32, %c0_i32_0 : i32, i32
  }
  func.func @transform_4(%arg0: i32) -> (i32, i32) {
    %c0_i32 = arith.constant 0 : i32
    %c0_i32_0 = arith.constant 0 : i32
    %c0_i32_1 = arith.constant 0 : i32
    return %c0_i32, %c0_i32_0 : i32, i32
  }
  func.func @transform_5(%arg0: i32) -> (i32, i32) {
    %c0_i32 = arith.constant 0 : i32
    %c0_i32_0 = arith.constant 0 : i32
    return %arg0, %c0_i32 : i32, i32
  }
  func.func @transform_6(%arg0: i32) -> (i32, i32) {
    %c0_i32 = arith.constant 0 : i32
    %c0_i32_0 = arith.constant 0 : i32
    return %arg0, %c0_i32 : i32, i32
  }
}

</mosaic_0001>

<llo_original>
// kernel: tpu_custom_call.1
$region0: #{tpu_custom_call.1}
  #allocation0 [shape = 'u32[]', space=smem, size = 0x4, offset = 0x4, fixed_abs, tag = 'smem constant byte address 0x4 - core index']
  #allocation1 [shape = 'u32[144,128]{1,0:T(1,128)}', space=vmem, size = 0x12000, scoped, tag = 'internal scratch']
  %s0 = inlined_call_operand.hbm [shape: f32[8,768], index: 0, kind: input, shape index: {}]
  %s1 = inlined_call_operand.hbm [shape: bf16[768,128], index: 1, kind: input, shape index: {}]
  %s2 = inlined_call_operand.vmem [shape: f32[1,128], index: 2, kind: input, shape index: {}]
  %s3 = inlined_call_operand.hbm [shape: bf16[128,256], index: 3, kind: input, shape index: {}]
  %s4 = inlined_call_operand.vmem [shape: f32[1,256], index: 4, kind: input, shape index: {}]
  %s5 = inlined_call_operand.vmem [shape: s8[8,256], index: 5, kind: input, shape index: {}]
  %s6 = inlined_call_operand.hbm [shape: f32[8,256], index: 6, kind: output, shape index: {}]
  %s7 = sld [smem:[#allocation0]]
  $region46: #{tpu_custom_call.1} parent=0
    _
  %s9 = ssub.s32 1, %s7
  %s10 = scalar_select 0, %s9, %s7
  $region1: #{tpu_custom_call.1} parent=0
    #allocation2 [shape = 'u8[24576]{0}', space=vmem, size = 0x6000, scoped, tag = 'input window, operand 0, single buffered']
    #allocation3 [shape = 's32[1]{0}', space=sflag, size = 0x4, scoped, tag = 'scoped memory for tpu_custom_call.1']
    #allocation4 [shape = 's32[1]{0}', space=sflag, size = 0x4, scoped, tag = 'scoped memory for tpu_custom_call.1']
    #allocation5 [shape = 'u8[196608]{0}', space=vmem, size = 0x30000, scoped, tag = 'input window, operand 1, single buffered']
    #allocation6 [shape = 's32[1]{0}', space=sflag, size = 0x4, scoped, tag = 'scoped memory for tpu_custom_call.1']
    #allocation7 [shape = 'u8[65536]{0}', space=vmem, size = 0x10000, scoped, tag = 'input window, operand 3, single buffered']
    #allocation8 [shape = 'u8[8192]{0}', space=vmem, size = 0x2000, scoped, tag = 'output window, operand 0, single buffered']
    %11 = vsyncpa [#allocation3], 0
    %12 = vsyncpa [#allocation6], 0
    %13 = vsyncpa [#allocation4], 0
    // Predicated region
    $region2: #{tpu_custom_call.1} parent=1 // pred_check
      _
    $region3: #{tpu_custom_call.1} parent=1 // pred_check_branch
      %15 = sbr.rel (0) target = $region5
    $region4: #{tpu_custom_call.1} parent=1 // pred_region
      %s17 = ssub.s32 768, 768
      %18 = vsyncadd [#allocation3], %s17
      %s20 = sshll.u32 [#allocation2], 4
      %s21 = int_to_ptr.vmem [resolvable:$true] %s20
      %23 = dma.hbm_to_vmem [thread:$0]  %s0, 768, %s21, [#allocation3]
    $region5: #{tpu_custom_call.1} parent=1 // pred_fallthru
      _
    // Predicated region
    $region6: #{tpu_custom_call.1} parent=1 // pred_check
      _
    $region7: #{tpu_custom_call.1} parent=1 // pred_check_branch
      %25 = sbr.rel (0) target = $region9
    $region8: #{tpu_custom_call.1} parent=1 // pred_region
      %s27 = ssub.s32 6144, 6144
      %28 = vsyncadd [#allocation6], %s27
      %s29 = sshll.u32 [#allocation5], 4
      %s30 = int_to_ptr.vmem [resolvable:$true] %s29
      %35 = dma.hbm_to_vmem [thread:$0]  %s1, 6144, %s30, [#allocation6], 64, 64, 4
    $region9: #{tpu_custom_call.1} parent=1 // pred_fallthru
      _
    // Predicated region
    $region10: #{tpu_custom_call.1} parent=1 // pred_check
      _
    $region11: #{tpu_custom_call.1} parent=1 // pred_check_branch
      %37 = sbr.rel (0) target = $region13
    $region12: #{tpu_custom_call.1} parent=1 // pred_region
      _
    $region13: #{tpu_custom_call.1} parent=1 // pred_fallthru
      _
    // Predicated region
    $region14: #{tpu_custom_call.1} parent=1 // pred_check
      _
    $region15: #{tpu_custom_call.1} parent=1 // pred_check_branch
      %39 = sbr.rel (0) target = $region17
    $region16: #{tpu_custom_call.1} parent=1 // pred_region
      %s41 = ssub.s32 2048, 2048
      %42 = vsyncadd [#allocation6], %s41
      %s43 = sshll.u32 [#allocation7], 4
      %s44 = int_to_ptr.vmem [resolvable:$true] %s43
      %49 = dma.hbm_to_vmem [thread:$0]  %s3, 2048, %s44, [#allocation6], 128, 128, 8
    $region17: #{tpu_custom_call.1} parent=1 // pred_fallthru
      _
    // Predicated region
    $region18: #{tpu_custom_call.1} parent=1 // pred_check
      _
    $region19: #{tpu_custom_call.1} parent=1 // pred_check_branch
      %51 = sbr.rel (0) target = $region21
    $region20: #{tpu_custom_call.1} parent=1 // pred_region
      _
    $region21: #{tpu_custom_call.1} parent=1 // pred_fallthru
      _
    // Predicated region
    $region22: #{tpu_custom_call.1} parent=1 // pred_check
      _
    $region23: #{tpu_custom_call.1} parent=1 // pred_check_branch
      %53 = sbr.rel (0) target = $region25
    $region24: #{tpu_custom_call.1} parent=1 // pred_region
      _
    $region25: #{tpu_custom_call.1} parent=1 // pred_fallthru
      _
    // Predicated region
    $region26: #{tpu_custom_call.1} parent=1 // pred_check
      _
    $region27: #{tpu_custom_call.1} parent=1 // pred_check_branch
      %55 = sbr.rel (0) target = $region29
    $region28: #{tpu_custom_call.1} parent=1 // pred_region
      %56 = dma.done [#allocation3], 768
    $region29: #{tpu_custom_call.1} parent=1 // pred_fallthru
      _
    // Predicated region
    $region30: #{tpu_custom_call.1} parent=1 // pred_check
      _
    $region31: #{tpu_custom_call.1} parent=1 // pred_check_branch
      %58 = sbr.rel (0) target = $region33
    $region32: #{tpu_custom_call.1} parent=1 // pred_region
      %59 = dma.done [#allocation6], 6144
    $region33: #{tpu_custom_call.1} parent=1 // pred_fallthru
      _
    // Predicated region
    $region34: #{tpu_custom_call.1} parent=1 // pred_check
      _
    $region35: #{tpu_custom_call.1} parent=1 // pred_check_branch
      %61 = sbr.rel (0) target = $region37
    $region36: #{tpu_custom_call.1} parent=1 // pred_region
      %62 = dma.done [#allocation6], 2048
    $region37: #{tpu_custom_call.1} parent=1 // pred_fallthru
      _
    %v66 = vld [vmem:[#allocation2] sm:$0xff]
    %v67 = vld [vmem:[#allocation2 + $0x8] sm:$0xff]
    %v68 = vld [vmem:[#allocation2 + $0x10] sm:$0xff]
    %v69 = vld [vmem:[#allocation2 + $0x18] sm:$0xff]
    %v70 = vld [vmem:[#allocation2 + $0x20] sm:$0xff]
    %v71 = vld [vmem:[#allocation2 + $0x28] sm:$0xff]
    %v72 = vpack.c.bf16 %v66, %v66
    %v73 = vpack.c.bf16 %v67, %v67
    %v74 = vpack.c.bf16 %v68, %v68
    %v75 = vpack.c.bf16 %v69, %v69
    %v76 = vpack.c.bf16 %v70, %v70
    %v77 = vpack.c.bf16 %v71, %v71
    %v78 = vld [vmem:[#allocation5] sm:$0xf]
    %v79 = vld [vmem:[#allocation5 + $0x4] sm:$0xf]
    %v80 = vld [vmem:[#allocation5 + $0x8] sm:$0xf]
    %v81 = vld [vmem:[#allocation5 + $0xc] sm:$0xf]
    %v82 = vld [vmem:[#allocation5 + $0x10] sm:$0xf]
    %v83 = vld [vmem:[#allocation5 + $0x14] sm:$0xf]
    %v84 = vld [vmem:[#allocation5 + $0x18] sm:$0xf]
    %v85 = vld [vmem:[#allocation5 + $0x1c] sm:$0xf]
    %v86 = vld [vmem:[#allocation5 + $0x20] sm:$0xf]
    %v87 = vld [vmem:[#allocation5 + $0x24] sm:$0xf]
    %v88 = vld [vmem:[#allocation5 + $0x28] sm:$0xf]
    %v89 = vld [vmem:[#allocation5 + $0x2c] sm:$0xf]
    %v90 = vld [vmem:[#allocation5 + $0x30] sm:$0xf]
    %v91 = vld [vmem:[#allocation5 + $0x34] sm:$0xf]
    %v92 = vld [vmem:[#allocation5 + $0x38] sm:$0xf]
    %v93 = vld [vmem:[#allocation5 + $0x3c] sm:$0xf]
    %v94 = vld [vmem:[#allocation5 + $0x40] sm:$0xf]
    %v95 = vld [vmem:[#allocation5 + $0x44] sm:$0xf]
    %v96 = vld [vmem:[#allocation5 + $0x48] sm:$0xf]
    %v97 = vld [vmem:[#allocation5 + $0x4c] sm:$0xf]
    %v98 = vld [vmem:[#allocation5 + $0x50] sm:$0xf]
    %v99 = vld [vmem:[#allocation5 + $0x54] sm:$0xf]
    %v100 = vld [vmem:[#allocation5 + $0x58] sm:$0xf]
    %v101 = vld [vmem:[#allocation5 + $0x5c] sm:$0xf]
    %v102 = vld [vmem:[#allocation5 + $0x60] sm:$0xf]
    %v103 = vld [vmem:[#allocation5 + $0x64] sm:$0xf]
    %v104 = vld [vmem:[#allocation5 + $0x68] sm:$0xf]
    %v105 = vld [vmem:[#allocation5 + $0x6c] sm:$0xf]
    %v106 = vld [vmem:[#allocation5 + $0x70] sm:$0xf]
    %v107 = vld [vmem:[#allocation5 + $0x74] sm:$0xf]
    %v108 = vld [vmem:[#allocation5 + $0x78] sm:$0xf]
    %v109 = vld [vmem:[#allocation5 + $0x7c] sm:$0xf]
    %v110 = vld [vmem:[#allocation5 + $0x80] sm:$0xf]
    %v111 = vld [vmem:[#allocation5 + $0x84] sm:$0xf]
    %v112 = vld [vmem:[#allocation5 + $0x88] sm:$0xf]
    %v113 = vld [vmem:[#allocation5 + $0x8c] sm:$0xf]
    %v114 = vld [vmem:[#allocation5 + $0x90] sm:$0xf]
    %v115 = vld [vmem:[#allocation5 + $0x94] sm:$0xf]
    %v116 = vld [vmem:[#allocation5 + $0x98] sm:$0xf]
    %v117 = vld [vmem:[#allocation5 + $0x9c] sm:$0xf]
    %v118 = vld [vmem:[#allocation5 + $0xa0] sm:$0xf]
    %v119 = vld [vmem:[#allocation5 + $0xa4] sm:$0xf]
    %v120 = vld [vmem:[#allocation5 + $0xa8] sm:$0xf]
    %v121 = vld [vmem:[#allocation5 + $0xac] sm:$0xf]
    %v122 = vld [vmem:[#allocation5 + $0xb0] sm:$0xf]
    %v123 = vld [vmem:[#allocation5 + $0xb4] sm:$0xf]
    %v124 = vld [vmem:[#allocation5 + $0xb8] sm:$0xf]
    %v125 = vld [vmem:[#allocation5 + $0xbc] sm:$0xf]
    %v126 = vld [vmem:[#allocation5 + $0xc0] sm:$0xf]
    %v127 = vld [vmem:[#allocation5 + $0xc4] sm:$0xf]
    %v128 = vld [vmem:[#allocation5 + $0xc8] sm:$0xf]
    %v129 = vld [vmem:[#allocation5 + $0xcc] sm:$0xf]
    %v130 = vld [vmem:[#allocation5 + $0xd0] sm:$0xf]
    %v131 = vld [vmem:[#allocation5 + $0xd4] sm:$0xf]
    %v132 = vld [vmem:[#allocation5 + $0xd8] sm:$0xf]
    %v133 = vld [vmem:[#allocation5 + $0xdc] sm:$0xf]
    %v134 = vld [vmem:[#allocation5 + $0xe0] sm:$0xf]
    %v135 = vld [vmem:[#allocation5 + $0xe4] sm:$0xf]
    %v136 = vld [vmem:[#allocation5 + $0xe8] sm:$0xf]
    %v137 = vld [vmem:[#allocation5 + $0xec] sm:$0xf]
    %v138 = vld [vmem:[#allocation5 + $0xf0] sm:$0xf]
    %v139 = vld [vmem:[#allocation5 + $0xf4] sm:$0xf]
    %v140 = vld [vmem:[#allocation5 + $0xf8] sm:$0xf]
    %v141 = vld [vmem:[#allocation5 + $0xfc] sm:$0xf]
    %v142 = vld [vmem:[#allocation5 + $0x100] sm:$0xf]
    %v143 = vld [vmem:[#allocation5 + $0x104] sm:$0xf]
    %v144 = vld [vmem:[#allocation5 + $0x108] sm:$0xf]
    %v145 = vld [vmem:[#allocation5 + $0x10c] sm:$0xf]
    %v146 = vld [vmem:[#allocation5 + $0x110] sm:$0xf]
    %v147 = vld [vmem:[#allocation5 + $0x114] sm:$0xf]
    %v148 = vld [vmem:[#allocation5 + $0x118] sm:$0xf]
    %v149 = vld [vmem:[#allocation5 + $0x11c] sm:$0xf]
    %v150 = vld [vmem:[#allocation5 + $0x120] sm:$0xf]
    %v151 = vld [vmem:[#allocation5 + $0x124] sm:$0xf]
    %v152 = vld [vmem:[#allocation5 + $0x128] sm:$0xf]
    %v153 = vld [vmem:[#allocation5 + $0x12c] sm:$0xf]
    %v154 = vld [vmem:[#allocation5 + $0x130] sm:$0xf]
    %v155 = vld [vmem:[#allocation5 + $0x134] sm:$0xf]
    %v156 = vld [vmem:[#allocation5 + $0x138] sm:$0xf]
    %v157 = vld [vmem:[#allocation5 + $0x13c] sm:$0xf]
    %v158 = vld [vmem:[#allocation5 + $0x140] sm:$0xf]
    %v159 = vld [vmem:[#allocation5 + $0x144] sm:$0xf]
    %v160 = vld [vmem:[#allocation5 + $0x148] sm:$0xf]
    %v161 = vld [vmem:[#allocation5 + $0x14c] sm:$0xf]
    %v162 = vld [vmem:[#allocation5 + $0x150] sm:$0xf]
    %v163 = vld [vmem:[#allocation5 + $0x154] sm:$0xf]
    %v164 = vld [vmem:[#allocation5 + $0x158] sm:$0xf]
    %v165 = vld [vmem:[#allocation5 + $0x15c] sm:$0xf]
    %v166 = vld [vmem:[#allocation5 + $0x160] sm:$0xf]
    %v167 = vld [vmem:[#allocation5 + $0x164] sm:$0xf]
    %v168 = vld [vmem:[#allocation5 + $0x168] sm:$0xf]
    %v169 = vld [vmem:[#allocation5 + $0x16c] sm:$0xf]
    %v170 = vld [vmem:[#allocation5 + $0x170] sm:$0xf]
    %v171 = vld [vmem:[#allocation5 + $0x174] sm:$0xf]
    %v172 = vld [vmem:[#allocation5 + $0x178] sm:$0xf]
    %v173 = vld [vmem:[#allocation5 + $0x17c] sm:$0xf]
    %v174 = vld [vmem:[%s2] sm:$0x1]
    %v176 = vlaneseq
    %v177 = vshrl.u32 %v176, 7
    %v178 = vsub.s32 0, %v177
    %v179 = vrot.slane %v174, %v178
    %v277 = vunpack.c.l.b16 %v78
    %v278 = vunpack.c.l.b16 %v79
    %v279 = vunpack.c.l.b16 %v80
    %v280 = vunpack.c.l.b16 %v81
    %v281 = vunpack.c.l.b16 %v82
    %v282 = vunpack.c.l.b16 %v83
    %v283 = vunpack.c.l.b16 %v84
    %v284 = vunpack.c.l.b16 %v85
    %v285 = vunpack.c.l.b16 %v86
    %v286 = vunpack.c.l.b16 %v87
    %v287 = vunpack.c.l.b16 %v88
    %v288 = vunpack.c.l.b16 %v89
    %v289 = vunpack.c.l.b16 %v90
    %v290 = vunpack.c.l.b16 %v91
    %v291 = vunpack.c.l.b16 %v92
    %v292 = vunpack.c.l.b16 %v93
    %v293 = vunpack.c.l.b16 %v94
    %v294 = vunpack.c.l.b16 %v95
    %v295 = vunpack.c.l.b16 %v96
    %v296 = vunpack.c.l.b16 %v97
    %v297 = vunpack.c.l.b16 %v98
    %v298 = vunpack.c.l.b16 %v99
    %v299 = vunpack.c.l.b16 %v100
    %v300 = vunpack.c.l.b16 %v101
    %v301 = vunpack.c.l.b16 %v102
    %v302 = vunpack.c.l.b16 %v103
    %v303 = vunpack.c.l.b16 %v104
    %v304 = vunpack.c.l.b16 %v105
    %v305 = vunpack.c.l.b16 %v106
    %v306 = vunpack.c.l.b16 %v107
    %v307 = vunpack.c.l.b16 %v108
    %v308 = vunpack.c.l.b16 %v109
    %v309 = vunpack.c.l.b16 %v110
    %v310 = vunpack.c.l.b16 %v111
    %v311 = vunpack.c.l.b16 %v112
    %v312 = vunpack.c.l.b16 %v113
    %v313 = vunpack.c.l.b16 %v114
    %v314 = vunpack.c.l.b16 %v115
    %v315 = vunpack.c.l.b16 %v116
    %v316 = vunpack.c.l.b16 %v117
    %v317 = vunpack.c.l.b16 %v118
    %v318 = vunpack.c.l.b16 %v119
    %v319 = vunpack.c.l.b16 %v120
    %v320 = vunpack.c.l.b16 %v121
    %v321 = vunpack.c.l.b16 %v122
    %v322 = vunpack.c.l.b16 %v123
    %v323 = vunpack.c.l.b16 %v124
    %v324 = vunpack.c.l.b16 %v125
    %v325 = vunpack.c.l.b16 %v126
    %v326 = vunpack.c.l.b16 %v127
    %v327 = vunpack.c.l.b16 %v128
    %v328 = vunpack.c.l.b16 %v129
    %v329 = vunpack.c.l.b16 %v130
    %v330 = vunpack.c.l.b16 %v131
    %v331 = vunpack.c.l.b16 %v132
    %v332 = vunpack.c.l.b16 %v133
    %v333 = vunpack.c.l.b16 %v134
    %v334 = vunpack.c.l.b16 %v135
    %v335 = vunpack.c.l.b16 %v136
    %v336 = vunpack.c.l.b16 %v137
    %v337 = vunpack.c.l.b16 %v138
    %v338 = vunpack.c.l.b16 %v139
    %v339 = vunpack.c.l.b16 %v140
    %v340 = vunpack.c.l.b16 %v141
    %v341 = vunpack.c.l.b16 %v142
    %v342 = vunpack.c.l.b16 %v143
    %v343 = vunpack.c.l.b16 %v144
    %v344 = vunpack.c.l.b16 %v145
    %v345 = vunpack.c.l.b16 %v146
    %v346 = vunpack.c.l.b16 %v147
    %v347 = vunpack.c.l.b16 %v148
    %v348 = vunpack.c.l.b16 %v149
    %v349 = vunpack.c.l.b16 %v150
    %v350 = vunpack.c.l.b16 %v151
    %v351 = vunpack.c.l.b16 %v152
    %v352 = vunpack.c.l.b16 %v153
    %v353 = vunpack.c.l.b16 %v154
    %v354 = vunpack.c.l.b16 %v155
    %v355 = vunpack.c.l.b16 %v156
    %v356 = vunpack.c.l.b16 %v157
    %v357 = vunpack.c.l.b16 %v158
    %v358 = vunpack.c.l.b16 %v159
    %v359 = vunpack.c.l.b16 %v160
    %v360 = vunpack.c.l.b16 %v161
    %v361 = vunpack.c.l.b16 %v162
    %v362 = vunpack.c.l.b16 %v163
    %v363 = vunpack.c.l.b16 %v164
    %v364 = vunpack.c.l.b16 %v165
    %v365 = vunpack.c.l.b16 %v166
    %v366 = vunpack.c.l.b16 %v167
    %v367 = vunpack.c.l.b16 %v168
    %v368 = vunpack.c.l.b16 %v169
    %v369 = vunpack.c.l.b16 %v170
    %v370 = vunpack.c.l.b16 %v171
    %v371 = vunpack.c.l.b16 %v172
    %v372 = vunpack.c.l.b16 %v173
    %v373 = vpack.c.b16 %v278, %v277
    %v374 = vpack.c.b16 %v280, %v279
    %v375 = vpack.c.b16 %v282, %v281
    %v376 = vpack.c.b16 %v284, %v283
    %v377 = vpack.c.b16 %v286, %v285
    %v378 = vpack.c.b16 %v288, %v287
    %v379 = vpack.c.b16 %v290, %v289
    %v380 = vpack.c.b16 %v292, %v291
    %v381 = vpack.c.b16 %v294, %v293
    %v382 = vpack.c.b16 %v296, %v295
    %v383 = vpack.c.b16 %v298, %v297
    %v384 = vpack.c.b16 %v300, %v299
    %v385 = vpack.c.b16 %v302, %v301
    %v386 = vpack.c.b16 %v304, %v303
    %v387 = vpack.c.b16 %v306, %v305
    %v388 = vpack.c.b16 %v308, %v307
    %v389 = vpack.c.b16 %v310, %v309
    %v390 = vpack.c.b16 %v312, %v311
    %v391 = vpack.c.b16 %v314, %v313
    %v392 = vpack.c.b16 %v316, %v315
    %v393 = vpack.c.b16 %v318, %v317
    %v394 = vpack.c.b16 %v320, %v319
    %v395 = vpack.c.b16 %v322, %v321
    %v396 = vpack.c.b16 %v324, %v323
    %v397 = vpack.c.b16 %v326, %v325
    %v398 = vpack.c.b16 %v328, %v327
    %v399 = vpack.c.b16 %v330, %v329
    %v400 = vpack.c.b16 %v332, %v331
    %v401 = vpack.c.b16 %v334, %v333
    %v402 = vpack.c.b16 %v336, %v335
    %v403 = vpack.c.b16 %v338, %v337
    %v404 = vpack.c.b16 %v340, %v339
    %v405 = vpack.c.b16 %v342, %v341
    %v406 = vpack.c.b16 %v344, %v343
    %v407 = vpack.c.b16 %v346, %v345
    %v408 = vpack.c.b16 %v348, %v347
    %v409 = vpack.c.b16 %v350, %v349
    %v410 = vpack.c.b16 %v352, %v351
    %v411 = vpack.c.b16 %v354, %v353
    %v412 = vpack.c.b16 %v356, %v355
    %v413 = vpack.c.b16 %v358, %v357
    %v414 = vpack.c.b16 %v360, %v359
    %v415 = vpack.c.b16 %v362, %v361
    %v416 = vpack.c.b16 %v364, %v363
    %v417 = vpack.c.b16 %v366, %v365
    %v418 = vpack.c.b16 %v368, %v367
    %v419 = vpack.c.b16 %v370, %v369
    %v420 = vpack.c.b16 %v372, %v371
    %469 = vmatprep.subr.bf16.mxu0 0
    %470 = vmatpush1.bf16.msra.mxu0 %v380
    %471 = vmatprep.subr.bf16.mxu0 0
    %472 = vmatpush1.bf16.msra.mxu0 %v379
    %473 = vmatprep.subr.bf16.mxu0 0
    %474 = vmatpush1.bf16.msra.mxu0 %v378
    %475 = vmatprep.subr.bf16.mxu0 0
    %476 = vmatpush1.bf16.msra.mxu0 %v377
    %477 = vmatprep.subr.bf16.mxu0 0
    %478 = vmatpush1.bf16.msra.mxu0 %v376
    %479 = vmatprep.subr.bf16.mxu0 0
    %480 = vmatpush1.bf16.msra.mxu0 %v375
    %481 = vmatprep.subr.bf16.mxu0 0
    %482 = vmatpush1.bf16.msra.mxu0 %v374
    %483 = vmatprep.subr.bf16.mxu0 0
    %484 = vmatpush1.bf16.msra.mxu0 %v373
    %485 = vmatprep.subr.bf16.mxu0 0
    %486 = vmatpush2.bf16.msra.mxu0 %v388
    %487 = vmatprep.subr.bf16.mxu0 0
    %488 = vmatpush2.bf16.msra.mxu0 %v387
    %489 = vmatprep.subr.bf16.mxu0 0
    %490 = vmatpush2.bf16.msra.mxu0 %v386
    %491 = vmatprep.subr.bf16.mxu0 0
    %492 = vmatpush2.bf16.msra.mxu0 %v385
    %493 = vmatprep.subr.bf16.mxu0 0
    %494 = vmatpush2.bf16.msra.mxu0 %v384
    %495 = vmatprep.subr.bf16.mxu0 0
    %496 = vmatpush2.bf16.msra.mxu0 %v383
    %497 = vmatprep.subr.bf16.mxu0 0
    %498 = vmatpush2.bf16.msra.mxu0 %v382
    %499 = vmatprep.subr.bf16.mxu0 0
    %500 = vmatpush2.bf16.msra.mxu0 %v381
    %501 = vmatprep.mubr.bf16.mxu0 %v73
    %502 = vmatmul.mubr.bf16.gmra.mxu0 %v72
    %v503 = vpop.f32.mrf.mxu0
    %v504 = vadd.f32 %v179, %v503
    %v505 = vpop.f32.mrf.mxu0
    %v506 = vpop.f32.mrf.mxu0
    %v507 = vpop.f32.mrf.mxu0
    %508 = vdwg.mxu0
    %509 = vmatprep.subr.bf16.mxu0 0
    %510 = vmatpush1.bf16.msra.mxu0 %v396
    %511 = vmatprep.subr.bf16.mxu0 0
    %512 = vmatpush1.bf16.msra.mxu0 %v395
    %513 = vmatprep.subr.bf16.mxu0 0
    %514 = vmatpush1.bf16.msra.mxu0 %v394
    %515 = vmatprep.subr.bf16.mxu0 0
    %516 = vmatpush1.bf16.msra.mxu0 %v393
    %517 = vmatprep.subr.bf16.mxu0 0
    %518 = vmatpush1.bf16.msra.mxu0 %v392
    %519 = vmatprep.subr.bf16.mxu0 0
    %520 = vmatpush1.bf16.msra.mxu0 %v391
    %521 = vmatprep.subr.bf16.mxu0 0
    %522 = vmatpush1.bf16.msra.mxu0 %v390
    %523 = vmatprep.subr.bf16.mxu0 0
    %524 = vmatpush1.bf16.msra.mxu0 %v389
    %525 = vmatprep.subr.bf16.mxu0 0
    %526 = vmatpush2.bf16.msra.mxu0 %v404
    %527 = vmatprep.subr.bf16.mxu0 0
    %528 = vmatpush2.bf16.msra.mxu0 %v403
    %529 = vmatprep.subr.bf16.mxu0 0
    %530 = vmatpush2.bf16.msra.mxu0 %v402
    %531 = vmatprep.subr.bf16.mxu0 0
    %532 = vmatpush2.bf16.msra.mxu0 %v401
    %533 = vmatprep.subr.bf16.mxu0 0
    %534 = vmatpush2.bf16.msra.mxu0 %v400
    %535 = vmatprep.subr.bf16.mxu0 0
    %536 = vmatpush2.bf16.msra.mxu0 %v399
    %537 = vmatprep.subr.bf16.mxu0 0
    %538 = vmatpush2.bf16.msra.mxu0 %v398
    %539 = vmatprep.subr.bf16.mxu0 0
    %540 = vmatpush2.bf16.msra.mxu0 %v397
    %541 = vmatprep.mubr.bf16.mxu0 %v75
    %542 = vmatmul.mubr.bf16.gmra.mxu0 %v74
    %v543 = vpop.f32.mrf.mxu0
    %v544 = vadd.f32 %v504, %v543
    %v545 = vpop.f32.mrf.mxu0
    %v546 = vpop.f32.mrf.mxu0
    %v547 = vpop.f32.mrf.mxu0
    %548 = vdwg.mxu0
    %549 = vmatprep.subr.bf16.mxu0 0
    %550 = vmatpush1.bf16.msra.mxu0 %v412
    %551 = vmatprep.subr.bf16.mxu0 0
    %552 = vmatpush1.bf16.msra.mxu0 %v411
    %553 = vmatprep.subr.bf16.mxu0 0
    %554 = vmatpush1.bf16.msra.mxu0 %v410
    %555 = vmatprep.subr.bf16.mxu0 0
    %556 = vmatpush1.bf16.msra.mxu0 %v409
    %557 = vmatprep.subr.bf16.mxu0 0
    %558 = vmatpush1.bf16.msra.mxu0 %v408
    %559 = vmatprep.subr.bf16.mxu0 0
    %560 = vmatpush1.bf16.msra.mxu0 %v407
    %561 = vmatprep.subr.bf16.mxu0 0
    %562 = vmatpush1.bf16.msra.mxu0 %v406
    %563 = vmatprep.subr.bf16.mxu0 0
    %564 = vmatpush1.bf16.msra.mxu0 %v405
    %565 = vmatprep.subr.bf16.mxu0 0
    %566 = vmatpush2.bf16.msra.mxu0 %v420
    %567 = vmatprep.subr.bf16.mxu0 0
    %568 = vmatpush2.bf16.msra.mxu0 %v419
    %569 = vmatprep.subr.bf16.mxu0 0
    %570 = vmatpush2.bf16.msra.mxu0 %v418
    %571 = vmatprep.subr.bf16.mxu0 0
    %572 = vmatpush2.bf16.msra.mxu0 %v417
    %573 = vmatprep.subr.bf16.mxu0 0
    %574 = vmatpush2.bf16.msra.mxu0 %v416
    %575 = vmatprep.subr.bf16.mxu0 0
    %576 = vmatpush2.bf16.msra.mxu0 %v415
    %577 = vmatprep.subr.bf16.mxu0 0
    %578 = vmatpush2.bf16.msra.mxu0 %v414
    %579 = vmatprep.subr.bf16.mxu0 0
    %580 = vmatpush2.bf16.msra.mxu0 %v413
    %581 = vmatprep.mubr.bf16.mxu0 %v77
    %582 = vmatmul.mubr.bf16.gmra.mxu0 %v76
    %v583 = vpop.f32.mrf.mxu0
    %v584 = vadd.f32 %v544, %v583
    %v585 = vpop.f32.mrf.mxu0
    %v586 = vpop.f32.mrf.mxu0
    %v587 = vpop.f32.mrf.mxu0
    %588 = vdwg.mxu0
    %v589 = vmax.f32 %v584, 0.0
    %v590 = vpack.c.bf16 %v589, %v589
    %v591 = vld [vmem:[#allocation7] sm:$0xff]
    %v592 = vld [vmem:[#allocation7 + $0x8] sm:$0xff]
    %v593 = vld [vmem:[#allocation7 + $0x10] sm:$0xff]
    %v594 = vld [vmem:[#allocation7 + $0x18] sm:$0xff]
    %v595 = vld [vmem:[#allocation7 + $0x20] sm:$0xff]
    %v596 = vld [vmem:[#allocation7 + $0x28] sm:$0xff]
    %v597 = vld [vmem:[#allocation7 + $0x30] sm:$0xff]
    %v598 = vld [vmem:[#allocation7 + $0x38] sm:$0xff]
    %v599 = vld [vmem:[#allocation7 + $0x40] sm:$0xff]
    %v600 = vld [vmem:[#allocation7 + $0x48] sm:$0xff]
    %v601 = vld [vmem:[#allocation7 + $0x50] sm:$0xff]
    %v602 = vld [vmem:[#allocation7 + $0x58] sm:$0xff]
    %v603 = vld [vmem:[#allocation7 + $0x60] sm:$0xff]
    %v604 = vld [vmem:[#allocation7 + $0x68] sm:$0xff]
    %v605 = vld [vmem:[#allocation7 + $0x70] sm:$0xff]
    %v606 = vld [vmem:[#allocation7 + $0x78] sm:$0xff]
    %v607 = vld [vmem:[%s4] sm:$0x3]
    %v609 = vlaneseq
    %v610 = vshrl.u32 %v609, 7
    %v611 = vsub.s32 0, %v610
    %v612 = vrot.slane %v607, %v611
    %v613 = vlaneseq
    %v614 = vshrl.u32 %v613, 7
    %v615 = vsub.s32 1, %v614
    %v616 = vrot.slane %v607, %v615
    %v635 = vunpack.c.l.b16 %v591
    %v636 = vunpack.c.h.b16 %v591
    %v637 = vunpack.c.l.b16 %v592
    %v638 = vunpack.c.h.b16 %v592
    %v639 = vunpack.c.l.b16 %v593
    %v640 = vunpack.c.h.b16 %v593
    %v641 = vunpack.c.l.b16 %v594
    %v642 = vunpack.c.h.b16 %v594
    %v643 = vunpack.c.l.b16 %v595
    %v644 = vunpack.c.h.b16 %v595
    %v645 = vunpack.c.l.b16 %v596
    %v646 = vunpack.c.h.b16 %v596
    %v647 = vunpack.c.l.b16 %v597
    %v648 = vunpack.c.h.b16 %v597
    %v649 = vunpack.c.l.b16 %v598
    %v650 = vunpack.c.h.b16 %v598
    %v651 = vunpack.c.l.b16 %v599
    %v652 = vunpack.c.h.b16 %v599
    %v653 = vunpack.c.l.b16 %v600
    %v654 = vunpack.c.h.b16 %v600
    %v655 = vunpack.c.l.b16 %v601
    %v656 = vunpack.c.h.b16 %v601
    %v657 = vunpack.c.l.b16 %v602
    %v658 = vunpack.c.h.b16 %v602
    %v659 = vunpack.c.l.b16 %v603
    %v660 = vunpack.c.h.b16 %v603
    %v661 = vunpack.c.l.b16 %v604
    %v662 = vunpack.c.h.b16 %v604
    %v663 = vunpack.c.l.b16 %v605
    %v664 = vunpack.c.h.b16 %v605
    %v665 = vunpack.c.l.b16 %v606
    %v666 = vunpack.c.h.b16 %v606
    %v667 = vpack.c.b16 %v637, %v635
    %v668 = vpack.c.b16 %v638, %v636
    %v669 = vpack.c.b16 %v641, %v639
    %v670 = vpack.c.b16 %v642, %v640
    %v671 = vpack.c.b16 %v645, %v643
    %v672 = vpack.c.b16 %v646, %v644
    %v673 = vpack.c.b16 %v649, %v647
    %v674 = vpack.c.b16 %v650, %v648
    %v675 = vpack.c.b16 %v653, %v651
    %v676 = vpack.c.b16 %v654, %v652
    %v677 = vpack.c.b16 %v657, %v655
    %v678 = vpack.c.b16 %v658, %v656
    %v679 = vpack.c.b16 %v661, %v659
    %v680 = vpack.c.b16 %v662, %v660
    %v681 = vpack.c.b16 %v665, %v663
    %v682 = vpack.c.b16 %v666, %v664
    %699 = vmatprep.subr.bf16.mxu0 %v682
    %700 = vmatpush1.bf16.msra.mxu0 %v681
    %701 = vmatprep.subr.bf16.mxu0 %v680
    %702 = vmatpush1.bf16.msra.mxu0 %v679
    %703 = vmatprep.subr.bf16.mxu0 %v678
    %704 = vmatpush1.bf16.msra.mxu0 %v677
    %705 = vmatprep.subr.bf16.mxu0 %v676
    %706 = vmatpush1.bf16.msra.mxu0 %v675
    %707 = vmatprep.subr.bf16.mxu0 %v674
    %708 = vmatpush1.bf16.msra.mxu0 %v673
    %709 = vmatprep.subr.bf16.mxu0 %v672
    %710 = vmatpush1.bf16.msra.mxu0 %v671
    %711 = vmatprep.subr.bf16.mxu0 %v670
    %712 = vmatpush1.bf16.msra.mxu0 %v669
    %713 = vmatprep.subr.bf16.mxu0 %v668
    %714 = vmatpush1.bf16.msra.mxu0 %v667
    %715 = vmatprep.subr.bf16.mxu0 0
    %716 = vmatpush2.bf16.msra.mxu0 0
    %717 = vmatprep.subr.bf16.mxu0 0
    %718 = vmatpush2.bf16.msra.mxu0 0
    %719 = vmatprep.subr.bf16.mxu0 0
    %720 = vmatpush2.bf16.msra.mxu0 0
    %721 = vmatprep.subr.bf16.mxu0 0
    %722 = vmatpush2.bf16.msra.mxu0 0
    %723 = vmatprep.subr.bf16.mxu0 0
    %724 = vmatpush2.bf16.msra.mxu0 0
    %725 = vmatprep.subr.bf16.mxu0 0
    %726 = vmatpush2.bf16.msra.mxu0 0
    %727 = vmatprep.subr.bf16.mxu0 0
    %728 = vmatpush2.bf16.msra.mxu0 0
    %729 = vmatprep.subr.bf16.mxu0 0
    %730 = vmatpush2.bf16.msra.mxu0 0
    %731 = vmatprep.mubr.bf16.mxu0 0
    %732 = vmatmul.mubr.bf16.gmra.mxu0 %v590
    %v733 = vpop.f32.mrf.mxu0
    %v734 = vadd.f32 %v612, %v733
    %v735 = vpop.f32.mrf.mxu0
    %v736 = vadd.f32 %v616, %v735
    %v737 = vpop.f32.mrf.mxu0
    %v738 = vpop.f32.mrf.mxu0
    %739 = vdwg.mxu0
    %v740 = vld [vmem:[%s5] sm:$0xf]
    %vm741 = vnez %v740
    %v742 = vsel %vm741, 16843009, 0
    %v743 = vunpack.c.0.s8 %v742
    %v744 = vunpack.c.1.s8 %v742
    %vm745 = vcmp.ne.s32.totalorder %v743, 0
    %vm746 = vcmp.ne.s32.totalorder %v744, 0
    %v747 = vsel %vm745, %v734, -inf
    %v748 = vsel %vm746, %v736, -inf
    %749 = vst [vmem:[#allocation8] sm:$0xff] %v747
    %750 = vst [vmem:[#allocation8 + $0x8] sm:$0xff] %v748
    // Predicated region
    $region38: #{tpu_custom_call.1} parent=1 // pred_check
      _
    $region39: #{tpu_custom_call.1} parent=1 // pred_check_branch
      %752 = sbr.rel (0) target = $region41
    $region40: #{tpu_custom_call.1} parent=1 // pred_region
      %s754 = ssub.s32 256, 256
      %755 = vsyncadd [#allocation4], %s754
      %s757 = sshll.u32 [#allocation8], 4
      %s758 = int_to_ptr.vmem [resolvable:$true] %s757
      %760 = dma.vmem_to_hbm [thread:$0]  %s758, 256, %s6, [#allocation4]
    $region41: #{tpu_custom_call.1} parent=1 // pred_fallthru
      _
    // Predicated region
    $region42: #{tpu_custom_call.1} parent=1 // pred_check
      _
    $region43: #{tpu_custom_call.1} parent=1 // pred_check_branch
      %762 = sbr.rel (0) target = $region45
    $region44: #{tpu_custom_call.1} parent=1 // pred_region
      %763 = dma.done [#allocation4], 256
    $region45: #{tpu_custom_call.1} parent=1 // pred_fallthru
      _
    %764 = vsyncpa [#allocation3], 1
    %765 = vsyncpa [#allocation6], 1
    %766 = vsyncpa [#allocation4], 1

</llo_original>
